<compile_context>
chip_gen: v6e
topology: v6e:2x2x1
jax: 0.10.0
libtpu: 0.0.40
codegen_flags: <defaults>
</compile_context>

<pallas_src>
import functools

import jax
import jax.numpy as jnp
from jax.experimental import pallas as pl
from jax.experimental.pallas import tpu as pltpu


def _round_up(x, m):
    return (x + m - 1) // m * m


def _pick_tile(total, target, unit=128):
    """Largest multiple of `unit` that divides `total` and is <= target."""
    n = total // unit
    best = unit
    for k in range(1, n + 1):
        if n % k == 0 and k * unit <= target:
            best = k * unit
    return best


def _tpu_defaults():
    """(vmem_budget_bytes, row_tile, h_tile) per TPU generation."""
    vmem = 64 * 1024 * 1024
    try:
        info = pltpu.get_tpu_info()
        vmem = int(getattr(info, "vmem_capacity_bytes", vmem))
    except Exception:
        pass
    budget = vmem * 3 // 4                 # leave ~25% headroom for compiler scratch
    if vmem > 96 * 1024 * 1024:            # v5e / v6e: 128 MiB VMEM per core
        return budget, 512, 1024
    return budget, 256, 512                # v7x (64 MiB) or unknown


def _layernorm_f32(x_ref, g_ref, be_ref, *, eps, c_true, c_pad):
    """f32 LayerNorm over the true C features of a (TM, Cp) tile."""
    x = x_ref[...].astype(jnp.float32)
    inv_c = jnp.float32(1.0 / c_true)
    mean = jnp.sum(x, axis=-1, keepdims=True) * inv_c        # padded lanes are 0
    xc = x - mean
    if c_pad:                                                # static python bool
        lane = jax.lax.broadcasted_iota(jnp.int32, x.shape, 1)
        xc = jnp.where(lane < c_true, xc, 0.0)
    var = jnp.sum(xc * xc, axis=-1, keepdims=True) * inv_c
    xn = xc * jax.lax.rsqrt(var + jnp.float32(eps))
    return xn * g_ref[...] + be_ref[...]                     # gamma/beta are (1, Cp)


def _gelu_erf(h):
    # exact (erf-based) GELU to match PyTorch nn.GELU() default
    return 0.5 * h * (1.0 + jax.lax.erf(h * jnp.float32(0.7071067811865476)))


def _mlp_kernel_resident(x_ref, g_ref, be_ref, w1_ref, b1_ref, w2_ref, b2_ref,
                         o_ref, *, eps, c_true, c_pad):
    """Weight-resident path: grid = (row_tiles,), W1/W2 are constant-index blocks."""
    xn = _layernorm_f32(x_ref, g_ref, be_ref, eps=eps, c_true=c_true, c_pad=c_pad)
    h = jnp.dot(xn.astype(w1_ref.dtype), w1_ref[...],
                preferred_element_type=jnp.float32) + b1_ref[...]
    h = _gelu_erf(h)
    out = jnp.dot(h.astype(w2_ref.dtype), w2_ref[...],
                  preferred_element_type=jnp.float32) + b2_ref[...]
    # Dropout(p=0.0) -> identity.
    o_ref[...] = out.astype(o_ref.dtype)


def _mlp_kernel_tiled(x_ref, g_ref, be_ref, w1_ref, b1_ref, w2_ref, b2_ref,
                      o_ref, xn_ref, acc_ref, *, eps, c_true, c_pad):
    """Fallback path: grid = (row_tiles, h_tiles); H reduction is trailing."""
    h_idx = pl.program_id(1)

    # Once per row tile: LayerNorm, cache bf16 activations, zero the accumulator.
    @pl.when(h_idx == 0)
    def _():
        xn = _layernorm_f32(x_ref, g_ref, be_ref, eps=eps, c_true=c_true, c_pad=c_pad)
        xn_ref[...] = xn.astype(xn_ref.dtype)
        acc_ref[...] = jnp.zeros_like(acc_ref)

    # fc_1 slab: (TM, Cp) x (Cp, TH) with f32 accumulation, then exact GELU.
    h = jnp.dot(xn_ref[...], w1_ref[...], preferred_element_type=jnp.float32)
    h = _gelu_erf(h + b1_ref[...])

    # fc_2 partial: (TM, TH) x (TH, Op) accumulated into f32 scratch.
    acc_ref[...] += jnp.dot(h.astype(w2_ref.dtype), w2_ref[...],
                            preferred_element_type=jnp.float32)

    @pl.when(h_idx == pl.num_programs(1) - 1)
    def _():
        # Dropout(p=0.0) -> identity.
        o_ref[...] = (acc_ref[...] + b2_ref[...]).astype(o_ref.dtype)


def prepare_mlp_params(gamma, beta, w1, b1, w2, b2):
    """Pad & cast the static MLP parameters ONCE (hoisted out of the hot path).

    w1: (C, H), w2: (H, O) stored (in, out), i.e. transposed vs torch Linear weight.
    """
    C, H = w1.shape
    O = w2.shape[1]
    Cp, Hp, Op = _round_up(C, 128), _round_up(H, 128), _round_up(O, 128)
    f32, bf16 = jnp.float32, jnp.bfloat16
    g2 = jnp.zeros((1, Cp), f32).at[0, :C].set(gamma.astype(f32))
    be2 = jnp.zeros((1, Cp), f32).at[0, :C].set(beta.astype(f32))
    w1p = jnp.zeros((Cp, Hp), bf16).at[:C, :H].set(w1.astype(bf16))
    b1p = jnp.zeros((1, Hp), f32).at[0, :H].set(b1.astype(f32))
    w2p = jnp.zeros((Hp, Op), bf16).at[:H, :O].set(w2.astype(bf16))
    b2p = jnp.zeros((1, Op), f32).at[0, :O].set(b2.astype(f32))
    return dict(C=C, H=H, O=O, Cp=Cp, Hp=Hp, Op=Op,
                gamma=g2, beta=be2, w1=w1p, b1=b1p, w2=w2p, b2=b2p)


def mlp_pallas(x, params, *, eps=1e-5, out_dtype=None,
               row_tile=None, h_tile=None, vmem_budget_bytes=None):
    """x: (..., C). params: from prepare_mlp_params. Returns (..., O)."""
    C, H, O = params["C"], params["H"], params["O"]
    Cp, Hp, Op = params["Cp"], params["Hp"], params["Op"]
    assert x.shape[-1] == C

    lead = x.shape[:-1]
    rows = 1
    for d in lead:
        rows *= d

    budget, def_tm, def_th = _tpu_defaults()
    if vmem_budget_bytes is not None:
        budget = int(vmem_budget_bytes)
    row_tile = row_tile or def_tm
    h_tile = h_tile or def_th
    out_dtype = jnp.dtype(out_dtype or x.dtype)

    # ---- row tiling: minimal padding for small batches, >=2 tiles when possible ----
    if rows <= row_tile:
        if rows > 128:
            TM = _round_up((rows + 1) // 2, 16)   # 2 row tiles -> both v7x cores busy
        else:
            TM = _round_up(max(rows, 8), 16)
    else:
        TM = row_tile

    x_bytes = x.dtype.itemsize
    o_bytes = out_dtype.itemsize
    small = 2 * (2 * Cp + Hp + Op) * 4            # gamma/beta/b1/b2 buffers

    def resident_fp(tm):
        return (2 * tm * Cp * x_bytes + 2 * tm * Op * o_bytes
                + 2 * (Cp * Hp + Hp * Op) * 2             # bf16 weights (2 bufs, safe)
                + tm * Hp * 4 + tm * Cp * 4               # LN / GELU intermediates
                + small)

    def tiled_fp(tm, th):
        return (2 * tm * Cp * x_bytes + 2 * tm * Op * o_bytes
                + 2 * (Cp * th + th * Op) * 2             # bf16 weight slabs
                + tm * Cp * 2 + tm * Op * 4               # xn cache + accumulator
                + tm * th * 4 + tm * Cp * 4               # GELU / LN intermediates
                + small)

    # ---- path selection: prefer weight-resident (no per-row-tile W1/W2 restream) ----
    TM_res = TM
    while resident_fp(TM_res) > budget and TM_res > 128:
        TM_res = max(128, _round_up(TM_res // 2, 128))
    use_resident = resident_fp(TM_res) <= budget

    if use_resident:
        TM = TM_res
        TH = Hp
        footprint = resident_fp(TM)
    else:
        TH = _pick_tile(Hp, h_tile)
        while tiled_fp(TM, TH) > budget and TH > 128:
            TH = _pick_tile(Hp, max(128, TH // 2))
        while tiled_fp(TM, TH) > budget and TM > 128:
            TM = max(128, _round_up(TM // 2, 128))
        # Weights are re-streamed once per row tile here -> grow TM while it fits.
        while rows > TM and TM < 1024 and tiled_fp(TM * 2, TH) <= budget:
            TM *= 2
        footprint = tiled_fp(TM, TH)

    rows_p = _round_up(rows, TM)
    vmem_limit = int(max(budget, footprint * 5 // 4, 32 * 1024 * 1024))

    # ---- pad activations (native dtype; f32 upcast happens inside the kernel) ----
    x2 = x.reshape(rows, C)
    if rows_p != rows or Cp != C:
        x2 = jnp.zeros((rows_p, Cp), x.dtype).at[:rows, :C].set(x2)

    c_pad = Cp != C

    if use_resident:
        kernel = functools.partial(_mlp_kernel_resident,
                                   eps=eps, c_true=C, c_pad=c_pad)
        out = pl.pallas_call(
            kernel,
            out_shape=jax.ShapeDtypeStruct((rows_p, Op), out_dtype),
            grid_spec=pltpu.PrefetchScalarGridSpec(
                num_scalar_prefetch=0,
                grid=(rows_p // TM,),
                in_specs=[
                    pl.BlockSpec((TM, Cp), lambda i: (i, 0)),   # x rows
                    pl.BlockSpec((1, Cp), lambda i: (0, 0)),    # gamma
                    pl.BlockSpec((1, Cp), lambda i: (0, 0)),    # beta
                    pl.BlockSpec((Cp, Hp), lambda i: (0, 0)),   # W1 (VMEM-resident)
                    pl.BlockSpec((1, Hp), lambda i: (0, 0)),    # b1
                    pl.BlockSpec((Hp, Op), lambda i: (0, 0)),   # W2 (VMEM-resident)
                    pl.BlockSpec((1, Op), lambda i: (0, 0)),    # b2
                ],
                out_specs=pl.BlockSpec((TM, Op), lambda i: (i, 0)),
            ),
            compiler_params=pltpu.CompilerParams(
                dimension_semantics=("parallel",),
                vmem_limit_bytes=vmem_limit,
            ),
        )(x2, params["gamma"], params["beta"], params["w1"], params["b1"],
          params["w2"], params["b2"])
    else:
        kernel = functools.partial(_mlp_kernel_tiled,
                                   eps=eps, c_true=C, c_pad=c_pad)
        out = pl.pallas_call(
            kernel,
            out_shape=jax.ShapeDtypeStruct((rows_p, Op), out_dtype),
            grid_spec=pltpu.PrefetchScalarGridSpec(
                num_scalar_prefetch=0,
                grid=(rows_p // TM, Hp // TH),
                in_specs=[
                    pl.BlockSpec((TM, Cp), lambda i, h: (i, 0)),   # x rows
                    pl.BlockSpec((1, Cp), lambda i, h: (0, 0)),    # gamma
                    pl.BlockSpec((1, Cp), lambda i, h: (0, 0)),    # beta
                    pl.BlockSpec((Cp, TH), lambda i, h: (0, h)),   # W1 H-slab
                    pl.BlockSpec((1, TH), lambda i, h: (0, h)),    # b1 H-slab
                    pl.BlockSpec((TH, Op), lambda i, h: (h, 0)),   # W2 H-slab
                    pl.BlockSpec((1, Op), lambda i, h: (0, 0)),    # b2
                ],
                out_specs=pl.BlockSpec((TM, Op), lambda i, h: (i, 0)),
                scratch_shapes=[
                    pltpu.VMEM((TM, Cp), jnp.bfloat16),   # cached LayerNorm output
                    pltpu.VMEM((TM, Op), jnp.float32),    # fc2 accumulator
                ],
            ),
            compiler_params=pltpu.CompilerParams(
                dimension_semantics=("parallel", "arbitrary"),
                vmem_limit_bytes=vmem_limit,
            ),
        )(x2, params["gamma"], params["beta"], params["w1"], params["b1"],
          params["w2"], params["b2"])

    return out[:rows, :O].reshape(lead + (O,))


def mlp_reference(x, gamma, beta, w1, b1, w2, b2, eps=1e-5):
    x = x.astype(jnp.float32)
    mean = jnp.mean(x, axis=-1, keepdims=True)
    var = jnp.mean((x - mean) ** 2, axis=-1, keepdims=True)
    xn = (x - mean) * jax.lax.rsqrt(var + eps) * gamma + beta
    h = xn @ w1 + b1
    h = 0.5 * h * (1.0 + jax.lax.erf(h / jnp.sqrt(2.0)))
    return h @ w2 + b2


if __name__ == "__main__":
    # Small shapes consistent with the MLP forward pass.
    B, N = 2, 8          # batch, sequence length  -> 16 rows
    C = 32               # in_features (= out_features by default)
    H = 64               # hidden_features
    O = C                # out_features defaults to in_features

    key = jax.random.PRNGKey(0)
    kx, kw1, kb1, kw2, kb2 = jax.random.split(key, 5)

    x = jax.random.normal(kx, (B, N, C), dtype=jnp.float32)

    # Deterministic synthetic parameters (shapes from MLP.__init__).
    gamma = jnp.ones((C,), jnp.float32)
    beta = jnp.zeros((C,), jnp.float32)
    # Linear weights stored as (in, out), i.e. transposed vs torch's (out, in).
    w1 = jax.random.normal(kw1, (C, H), dtype=jnp.float32) * 0.05
    b1 = jax.random.normal(kb1, (H,), dtype=jnp.float32) * 0.01
    w2 = jax.random.normal(kw2, (H, O), dtype=jnp.float32) * 0.05
    b2 = jax.random.normal(kb2, (O,), dtype=jnp.float32) * 0.01

    # Static parameter padding/casting done once, outside the hot path.
    params = prepare_mlp_params(gamma, beta, w1, b1, w2, b2)
    ref = mlp_reference(x, gamma, beta, w1, b1, w2, b2)

    # Path 1: weight-resident fast path (weights easily fit VMEM here).
    out = jax.block_until_ready(mlp_pallas(x, params))
    assert out.shape == (B, N, O)
    # bf16 MXU inputs with f32 accumulation -> bf16-level tolerance vs f32 ref.
    assert jnp.allclose(out, ref, atol=2e-2, rtol=2e-2), "resident path mismatch"

    # Path 2: force the H-tiled fallback (exercises the accumulator pipeline).
    out2 = jax.block_until_ready(
        mlp_pallas(x, params, vmem_budget_bytes=128 * 1024))
    assert jnp.allclose(out2, ref, atol=2e-2, rtol=2e-2), "tiled path mismatch"

    print("KERNEL_OK")
</pallas_src>

<mosaic_0001>
module attributes {stable_mosaic.version = 11 : i64} {
  func.func @_mlp_kernel_resident(%arg0: i32, %arg1: memref<16x128xf32, #tpu.memory_space<vmem>>, %arg2: memref<1x128xf32, #tpu.memory_space<vmem>>, %arg3: memref<1x128xf32, #tpu.memory_space<vmem>>, %arg4: memref<128x128xbf16, #tpu.memory_space<vmem>>, %arg5: memref<1x128xf32, #tpu.memory_space<vmem>>, %arg6: memref<128x128xbf16, #tpu.memory_space<vmem>>, %arg7: memref<1x128xf32, #tpu.memory_space<vmem>>, %arg8: memref<16x128xf32, #tpu.memory_space<vmem>>) attributes {dimension_semantics = [#tpu.dimension_semantics<parallel>], iteration_bounds = array<i64: 1>, scalar_prefetch = 0 : i64, scratch_operands = 0 : i64, tpu.core_type = #tpu.core_type<tc>, window_params = [{transform_indices = @transform_0, window_bounds = array<i64: 16, 128>}, {pipeline_mode = #tpu.pipeline_mode<synchronous>, transform_indices = @transform_1, window_bounds = array<i64: 1, 128>}, {pipeline_mode = #tpu.pipeline_mode<synchronous>, transform_indices = @transform_2, window_bounds = array<i64: 1, 128>}, {pipeline_mode = #tpu.pipeline_mode<synchronous>, transform_indices = @transform_3, window_bounds = array<i64: 128, 128>}, {pipeline_mode = #tpu.pipeline_mode<synchronous>, transform_indices = @transform_4, window_bounds = array<i64: 1, 128>}, {pipeline_mode = #tpu.pipeline_mode<synchronous>, transform_indices = @transform_5, window_bounds = array<i64: 128, 128>}, {pipeline_mode = #tpu.pipeline_mode<synchronous>, transform_indices = @transform_6, window_bounds = array<i64: 1, 128>}, {transform_indices = @transform_7, window_bounds = array<i64: 16, 128>}]} {
    %c0 = arith.constant 0 : index
    %c0_0 = arith.constant 0 : index
    %0 = vector.load %arg1[%c0, %c0_0] : memref<16x128xf32, #tpu.memory_space<vmem>>, vector<16x128xf32>
    %cst = arith.constant dense<0.000000e+00> : vector<16xf32>
    %1 = vector.multi_reduction <add>, %0, %cst [1] : vector<16x128xf32> to vector<16xf32>
    %2 = vector.shape_cast %1 : vector<16xf32> to vector<16x1xf32>
    %cst_1 = arith.constant 3.125000e-02 : f32
    %3 = vector.broadcast %cst_1 : f32 to vector<16x1xf32>
    %4 = arith.mulf %2, %3 : vector<16x1xf32>
    %5 = vector.broadcast %4 : vector<16x1xf32> to vector<16x128xf32>
    %6 = arith.subf %0, %5 : vector<16x128xf32>
    %7 = tpu.iota {dimensions = array<i32: 1>} : vector<16x128xi32>
    %c32_i32 = arith.constant 32 : i32
    %8 = vector.broadcast %c32_i32 : i32 to vector<16x128xi32>
    %9 = arith.cmpi slt, %7, %8 : vector<16x128xi32>
    %cst_2 = arith.constant 0.000000e+00 : f32
    %10 = vector.broadcast %cst_2 : f32 to vector<16x128xf32>
    %11 = arith.select %9, %6, %10 : vector<16x128xi1>, vector<16x128xf32>
    %12 = arith.mulf %11, %11 : vector<16x128xf32>
    %cst_3 = arith.constant dense<0.000000e+00> : vector<16xf32>
    %13 = vector.multi_reduction <add>, %12, %cst_3 [1] : vector<16x128xf32> to vector<16xf32>
    %14 = vector.shape_cast %13 : vector<16xf32> to vector<16x1xf32>
    %cst_4 = arith.constant 3.125000e-02 : f32
    %15 = vector.broadcast %cst_4 : f32 to vector<16x1xf32>
    %16 = arith.mulf %14, %15 : vector<16x1xf32>
    %cst_5 = arith.constant 9.99999974E-6 : f32
    %17 = vector.broadcast %cst_5 : f32 to vector<16x1xf32>
    %18 = arith.addf %16, %17 : vector<16x1xf32>
    %19 = math.rsqrt %18 : vector<16x1xf32>
    %20 = vector.broadcast %19 : vector<16x1xf32> to vector<16x128xf32>
    %21 = arith.mulf %11, %20 : vector<16x128xf32>
    %c0_6 = arith.constant 0 : index
    %c0_7 = arith.constant 0 : index
    %22 = vector.load %arg2[%c0_6, %c0_7] : memref<1x128xf32, #tpu.memory_space<vmem>>, vector<1x128xf32>
    %23 = vector.broadcast %22 : vector<1x128xf32> to vector<16x128xf32>
    %24 = arith.mulf %21, %23 : vector<16x128xf32>
    %c0_8 = arith.constant 0 : index
    %c0_9 = arith.constant 0 : index
    %25 = vector.load %arg3[%c0_8, %c0_9] : memref<1x128xf32, #tpu.memory_space<vmem>>, vector<1x128xf32>
    %26 = vector.broadcast %25 : vector<1x128xf32> to vector<16x128xf32>
    %27 = arith.addf %24, %26 : vector<16x128xf32>
    %28 = arith.truncf %27 : vector<16x128xf32> to vector<16x128xbf16>
    %c0_10 = arith.constant 0 : index
    %c0_11 = arith.constant 0 : index
    %29 = vector.load %arg4[%c0_10, %c0_11] : memref<128x128xbf16, #tpu.memory_space<vmem>>, vector<128x128xbf16>
    %cst_12 = arith.constant dense<0.000000e+00> : vector<16x128xf32>
    %30 = tpu.matmul %28, %29, %cst_12 {dimension_numbers = #tpu.dot_dimension_numbers<[1], [0], [0], [1], [0, 0, 1, 1], [], []>} : vector<16x128xbf16>, vector<128x128xbf16>, vector<16x128xf32> -> vector<16x128xf32>
    %c0_13 = arith.constant 0 : index
    %c0_14 = arith.constant 0 : index
    %31 = vector.load %arg5[%c0_13, %c0_14] : memref<1x128xf32, #tpu.memory_space<vmem>>, vector<1x128xf32>
    %32 = vector.broadcast %31 : vector<1x128xf32> to vector<16x128xf32>
    %33 = arith.addf %30, %32 : vector<16x128xf32>
    %cst_15 = arith.constant 5.000000e-01 : f32
    %34 = vector.broadcast %cst_15 : f32 to vector<16x128xf32>
    %35 = arith.mulf %34, %33 : vector<16x128xf32>
    %cst_16 = arith.constant 0.707106769 : f32
    %36 = vector.broadcast %cst_16 : f32 to vector<16x128xf32>
    %37 = arith.mulf %33, %36 : vector<16x128xf32>
    %38 = math.erf %37 : vector<16x128xf32>
    %cst_17 = arith.constant 1.000000e+00 : f32
    %39 = vector.broadcast %cst_17 : f32 to vector<16x128xf32>
    %40 = arith.addf %39, %38 : vector<16x128xf32>
    %41 = arith.mulf %35, %40 : vector<16x128xf32>
    %42 = arith.truncf %41 : vector<16x128xf32> to vector<16x128xbf16>
    %c0_18 = arith.constant 0 : index
    %c0_19 = arith.constant 0 : index
    %43 = vector.load %arg6[%c0_18, %c0_19] : memref<128x128xbf16, #tpu.memory_space<vmem>>, vector<128x128xbf16>
    %cst_20 = arith.constant dense<0.000000e+00> : vector<16x128xf32>
    %44 = tpu.matmul %42, %43, %cst_20 {dimension_numbers = #tpu.dot_dimension_numbers<[1], [0], [0], [1], [0, 0, 1, 1], [], []>} : vector<16x128xbf16>, vector<128x128xbf16>, vector<16x128xf32> -> vector<16x128xf32>
    %c0_21 = arith.constant 0 : index
    %c0_22 = arith.constant 0 : index
    %45 = vector.load %arg7[%c0_21, %c0_22] : memref<1x128xf32, #tpu.memory_space<vmem>>, vector<1x128xf32>
    %46 = vector.broadcast %45 : vector<1x128xf32> to vector<16x128xf32>
    %47 = arith.addf %44, %46 : vector<16x128xf32>
    %c0_23 = arith.constant 0 : index
    %c0_24 = arith.constant 0 : index
    %48 = vector.load %arg8[%c0_23, %c0_24] : memref<16x128xf32, #tpu.memory_space<vmem>>, vector<16x128xf32>
    tpu.vector_store %arg8[%c0_23, %c0_24], %47 {strides = array<i32>} : memref<16x128xf32, #tpu.memory_space<vmem>>, vector<16x128xf32>,
    return
  }
  func.func @transform_0(%arg0: i32) -> (i32, i32) {
    %c0_i32 = arith.constant 0 : i32
    %c0_i32_0 = arith.constant 0 : i32
    return %arg0, %c0_i32 : i32, i32
  }
  func.func @transform_1(%arg0: i32) -> (i32, i32) {
    %c0_i32 = arith.constant 0 : i32
    %c0_i32_0 = arith.constant 0 : i32
    %c0_i32_1 = arith.constant 0 : i32
    return %c0_i32, %c0_i32_0 : i32, i32
  }
  func.func @transform_2(%arg0: i32) -> (i32, i32) {
    %c0_i32 = arith.constant 0 : i32
    %c0_i32_0 = arith.constant 0 : i32
    %c0_i32_1 = arith.constant 0 : i32
    return %c0_i32, %c0_i32_0 : i32, i32
  }
  func.func @transform_3(%arg0: i32) -> (i32, i32) {
    %c0_i32 = arith.constant 0 : i32
    %c0_i32_0 = arith.constant 0 : i32
    %c0_i32_1 = arith.constant 0 : i32
    return %c0_i32, %c0_i32_0 : i32, i32
  }
  func.func @transform_4(%arg0: i32) -> (i32, i32) {
    %c0_i32 = arith.constant 0 : i32
    %c0_i32_0 = arith.constant 0 : i32
    %c0_i32_1 = arith.constant 0 : i32
    return %c0_i32, %c0_i32_0 : i32, i32
  }
  func.func @transform_5(%arg0: i32) -> (i32, i32) {
    %c0_i32 = arith.constant 0 : i32
    %c0_i32_0 = arith.constant 0 : i32
    %c0_i32_1 = arith.constant 0 : i32
    return %c0_i32, %c0_i32_0 : i32, i32
  }
  func.func @transform_6(%arg0: i32) -> (i32, i32) {
    %c0_i32 = arith.constant 0 : i32
    %c0_i32_0 = arith.constant 0 : i32
    %c0_i32_1 = arith.constant 0 : i32
    return %c0_i32, %c0_i32_0 : i32, i32
  }
  func.func @transform_7(%arg0: i32) -> (i32, i32) {
    %c0_i32 = arith.constant 0 : i32
    %c0_i32_0 = arith.constant 0 : i32
    return %arg0, %c0_i32 : i32, i32
  }
}

</mosaic_0001>

<llo_original>
// kernel: tpu_custom_call.1
$region0: #{tpu_custom_call.1}
  #allocation0 [shape = 'u32[]', space=smem, size = 0x4, offset = 0x4, fixed_abs, tag = 'smem constant byte address 0x4 - core index']
  #allocation1 [shape = 'u32[144,128]{1,0:T(1,128)}', space=vmem, size = 0x12000, scoped, tag = 'internal scratch']
  %s0 = inlined_call_operand.hbm [shape: f32[16,128], index: 0, kind: input, shape index: {}]
  %s1 = inlined_call_operand.vmem [shape: f32[1,128], index: 1, kind: input, shape index: {}]
  %s2 = inlined_call_operand.vmem [shape: f32[1,128], index: 2, kind: input, shape index: {}]
  %s3 = inlined_call_operand.hbm [shape: bf16[128,128], index: 3, kind: input, shape index: {}]
  %s4 = inlined_call_operand.vmem [shape: f32[1,128], index: 4, kind: input, shape index: {}]
  %s5 = inlined_call_operand.hbm [shape: bf16[128,128], index: 5, kind: input, shape index: {}]
  %s6 = inlined_call_operand.vmem [shape: f32[1,128], index: 6, kind: input, shape index: {}]
  %s7 = inlined_call_operand.hbm [shape: f32[16,128], index: 7, kind: output, shape index: {}]
  %s8 = sld [smem:[#allocation0]]
  $region50: #{tpu_custom_call.1} parent=0
    _
  %s10 = ssub.s32 1, %s8
  %s11 = scalar_select 0, %s10, %s8
  $region1: #{tpu_custom_call.1} parent=0
    #allocation2 [shape = 'u8[8192]{0}', space=vmem, size = 0x2000, scoped, tag = 'input window, operand 0, single buffered']
    #allocation3 [shape = 's32[1]{0}', space=sflag, size = 0x4, scoped, tag = 'scoped memory for tpu_custom_call.1']
    #allocation4 [shape = 's32[1]{0}', space=sflag, size = 0x4, scoped, tag = 'scoped memory for tpu_custom_call.1']
    #allocation5 [shape = 'u8[32768]{0}', space=vmem, size = 0x8000, scoped, tag = 'input window, operand 3, single buffered']
    #allocation6 [shape = 's32[1]{0}', space=sflag, size = 0x4, scoped, tag = 'scoped memory for tpu_custom_call.1']
    #allocation7 [shape = 'u8[32768]{0}', space=vmem, size = 0x8000, scoped, tag = 'input window, operand 5, single buffered']
    #allocation8 [shape = 'u8[8192]{0}', space=vmem, size = 0x2000, scoped, tag = 'output window, operand 0, single buffered']
    %12 = vsyncpa [#allocation3], 0
    %13 = vsyncpa [#allocation6], 0
    %14 = vsyncpa [#allocation4], 0
    // Predicated region
    $region2: #{tpu_custom_call.1} parent=1 // pred_check
      _
    $region3: #{tpu_custom_call.1} parent=1 // pred_check_branch
      %16 = sbr.rel (0) target = $region5
    $region4: #{tpu_custom_call.1} parent=1 // pred_region
      %s18 = ssub.s32 256, 256
      %19 = vsyncadd [#allocation3], %s18
      %s20 = sshll.u32 [#allocation2], 4
      %s21 = int_to_ptr.vmem [resolvable:$true] %s20
      %26 = dma.hbm_to_vmem [thread:$0]  %s0, 256, %s21, [#allocation3], 128, 128, 8
    $region5: #{tpu_custom_call.1} parent=1 // pred_fallthru
      _
    // Predicated region
    $region6: #{tpu_custom_call.1} parent=1 // pred_check
      _
    $region7: #{tpu_custom_call.1} parent=1 // pred_check_branch
      %28 = sbr.rel (0) target = $region9
    $region8: #{tpu_custom_call.1} parent=1 // pred_region
      _
    $region9: #{tpu_custom_call.1} parent=1 // pred_fallthru
      _
    // Predicated region
    $region10: #{tpu_custom_call.1} parent=1 // pred_check
      _
    $region11: #{tpu_custom_call.1} parent=1 // pred_check_branch
      %30 = sbr.rel (0) target = $region13
    $region12: #{tpu_custom_call.1} parent=1 // pred_region
      _
    $region13: #{tpu_custom_call.1} parent=1 // pred_fallthru
      _
    // Predicated region
    $region14: #{tpu_custom_call.1} parent=1 // pred_check
      _
    $region15: #{tpu_custom_call.1} parent=1 // pred_check_branch
      %32 = sbr.rel (0) target = $region17
    $region16: #{tpu_custom_call.1} parent=1 // pred_region
      %s34 = ssub.s32 1024, 1024
      %35 = vsyncadd [#allocation6], %s34
      %s36 = sshll.u32 [#allocation5], 4
      %s37 = int_to_ptr.vmem [resolvable:$true] %s36
      %42 = dma.hbm_to_vmem [thread:$0]  %s3, 1024, %s37, [#allocation6], 64, 64, 4
    $region17: #{tpu_custom_call.1} parent=1 // pred_fallthru
      _
    // Predicated region
    $region18: #{tpu_custom_call.1} parent=1 // pred_check
      _
    $region19: #{tpu_custom_call.1} parent=1 // pred_check_branch
      %44 = sbr.rel (0) target = $region21
    $region20: #{tpu_custom_call.1} parent=1 // pred_region
      _
    $region21: #{tpu_custom_call.1} parent=1 // pred_fallthru
      _
    // Predicated region
    $region22: #{tpu_custom_call.1} parent=1 // pred_check
      _
    $region23: #{tpu_custom_call.1} parent=1 // pred_check_branch
      %46 = sbr.rel (0) target = $region25
    $region24: #{tpu_custom_call.1} parent=1 // pred_region
      %s48 = ssub.s32 1024, 1024
      %49 = vsyncadd [#allocation6], %s48
      %s50 = sshll.u32 [#allocation7], 4
      %s51 = int_to_ptr.vmem [resolvable:$true] %s50
      %56 = dma.hbm_to_vmem [thread:$0]  %s5, 1024, %s51, [#allocation6], 64, 64, 4
    $region25: #{tpu_custom_call.1} parent=1 // pred_fallthru
      _
    // Predicated region
    $region26: #{tpu_custom_call.1} parent=1 // pred_check
      _
    $region27: #{tpu_custom_call.1} parent=1 // pred_check_branch
      %58 = sbr.rel (0) target = $region29
    $region28: #{tpu_custom_call.1} parent=1 // pred_region
      _
    $region29: #{tpu_custom_call.1} parent=1 // pred_fallthru
      _
    // Predicated region
    $region30: #{tpu_custom_call.1} parent=1 // pred_check
      _
    $region31: #{tpu_custom_call.1} parent=1 // pred_check_branch
      %60 = sbr.rel (0) target = $region33
    $region32: #{tpu_custom_call.1} parent=1 // pred_region
      %61 = dma.done [#allocation3], 256
    $region33: #{tpu_custom_call.1} parent=1 // pred_fallthru
      _
    // Predicated region
    $region34: #{tpu_custom_call.1} parent=1 // pred_check
      _
    $region35: #{tpu_custom_call.1} parent=1 // pred_check_branch
      %63 = sbr.rel (0) target = $region37
    $region36: #{tpu_custom_call.1} parent=1 // pred_region
      %64 = dma.done [#allocation6], 1024
    $region37: #{tpu_custom_call.1} parent=1 // pred_fallthru
      _
    // Predicated region
    $region38: #{tpu_custom_call.1} parent=1 // pred_check
      _
    $region39: #{tpu_custom_call.1} parent=1 // pred_check_branch
      %66 = sbr.rel (0) target = $region41
    $region40: #{tpu_custom_call.1} parent=1 // pred_region
      %67 = dma.done [#allocation6], 1024
    $region41: #{tpu_custom_call.1} parent=1 // pred_fallthru
      _
    %v69 = vld [vmem:[#allocation2] sm:$0xff]
    %v70 = vld [vmem:[#allocation2 + $0x8] sm:$0xff]
    %71 = vadd.xlane.f32.xlu0 %v69
    %v72 = vpop.xlane.xlu0 %71
    %73 = vadd.xlane.f32.xlu0 %v70
    %v74 = vpop.xlane.xlu0 %73
    %v75 = vmul.f32 %v72, 0.03125
    %v76 = vmul.f32 %v74, 0.03125
    %v77 = vsub.f32 %v69, %v75
    %v78 = vsub.f32 %v70, %v76
    %v79 = vlaneseq
    %v80 = vand.u32 %v79, 127
    %vm81 = vcmp.lt.s32.totalorder %v80, 32
    %v82 = vsel %vm81, %v77, 0.0
    %v83 = vsel %vm81, %v78, 0.0
    %v84 = vmul.f32 %v82, %v82
    %v85 = vmul.f32 %v83, %v83
    %86 = vadd.xlane.f32.xlu0 %v84
    %v87 = vpop.xlane.xlu0 %86
    %88 = vadd.xlane.f32.xlu0 %v85
    %v89 = vpop.xlane.xlu0 %88
    %v90 = vmul.f32 %v87, 0.03125
    %v91 = vmul.f32 %v89, 0.03125
    %v92 = vadd.f32 %v90, 1e-05
    %v93 = vadd.f32 %v91, 1e-05
    %v94 = vrsqrt.pop %v92
    %v95 = vrsqrt.pop %v93
    %v96 = vmul.f32 %v82, %v94
    %v97 = vmul.f32 %v83, %v95
    %v98 = vld [vmem:[%s1] sm:$0x1]
    %v100 = vlaneseq
    %v101 = vshrl.u32 %v100, 7
    %v102 = vsub.s32 0, %v101
    %v103 = vrot.slane %v98, %v102
    %v105 = vmul.f32 %v96, %v103
    %v106 = vmul.f32 %v97, %v103
    %v107 = vld [vmem:[%s2] sm:$0x1]
    %v109 = vlaneseq
    %v110 = vshrl.u32 %v109, 7
    %v111 = vsub.s32 0, %v110
    %v112 = vrot.slane %v107, %v111
    %v114 = vadd.f32 %v105, %v112
    %v115 = vadd.f32 %v106, %v112
    %v116 = vpack.c.bf16 %v115, %v114
    %v117 = vld [vmem:[#allocation5] sm:$0xf]
    %v118 = vld [vmem:[#allocation5 + $0x4] sm:$0xf]
    %v119 = vld [vmem:[#allocation5 + $0x8] sm:$0xf]
    %v120 = vld [vmem:[#allocation5 + $0xc] sm:$0xf]
    %v121 = vld [vmem:[#allocation5 + $0x10] sm:$0xf]
    %v122 = vld [vmem:[#allocation5 + $0x14] sm:$0xf]
    %v123 = vld [vmem:[#allocation5 + $0x18] sm:$0xf]
    %v124 = vld [vmem:[#allocation5 + $0x1c] sm:$0xf]
    %v125 = vld [vmem:[#allocation5 + $0x20] sm:$0xf]
    %v126 = vld [vmem:[#allocation5 + $0x24] sm:$0xf]
    %v127 = vld [vmem:[#allocation5 + $0x28] sm:$0xf]
    %v128 = vld [vmem:[#allocation5 + $0x2c] sm:$0xf]
    %v129 = vld [vmem:[#allocation5 + $0x30] sm:$0xf]
    %v130 = vld [vmem:[#allocation5 + $0x34] sm:$0xf]
    %v131 = vld [vmem:[#allocation5 + $0x38] sm:$0xf]
    %v132 = vld [vmem:[#allocation5 + $0x3c] sm:$0xf]
    %v133 = vld [vmem:[%s4] sm:$0x1]
    %v135 = vlaneseq
    %v136 = vshrl.u32 %v135, 7
    %v137 = vsub.s32 0, %v136
    %v138 = vrot.slane %v133, %v137
    %v156 = vunpack.c.l.b16 %v117
    %v157 = vunpack.c.l.b16 %v118
    %v158 = vunpack.c.l.b16 %v119
    %v159 = vunpack.c.l.b16 %v120
    %v160 = vunpack.c.l.b16 %v121
    %v161 = vunpack.c.l.b16 %v122
    %v162 = vunpack.c.l.b16 %v123
    %v163 = vunpack.c.l.b16 %v124
    %v164 = vunpack.c.l.b16 %v125
    %v165 = vunpack.c.l.b16 %v126
    %v166 = vunpack.c.l.b16 %v127
    %v167 = vunpack.c.l.b16 %v128
    %v168 = vunpack.c.l.b16 %v129
    %v169 = vunpack.c.l.b16 %v130
    %v170 = vunpack.c.l.b16 %v131
    %v171 = vunpack.c.l.b16 %v132
    %v172 = vpack.c.b16 %v157, %v156
    %v173 = vpack.c.b16 %v159, %v158
    %v174 = vpack.c.b16 %v161, %v160
    %v175 = vpack.c.b16 %v163, %v162
    %v176 = vpack.c.b16 %v165, %v164
    %v177 = vpack.c.b16 %v167, %v166
    %v178 = vpack.c.b16 %v169, %v168
    %v179 = vpack.c.b16 %v171, %v170
    %188 = vmatprep.subr.bf16.mxu0 0
    %189 = vmatpush1.bf16.msra.mxu0 %v179
    %190 = vmatprep.subr.bf16.mxu0 0
    %191 = vmatpush1.bf16.msra.mxu0 %v178
    %192 = vmatprep.subr.bf16.mxu0 0
    %193 = vmatpush1.bf16.msra.mxu0 %v177
    %194 = vmatprep.subr.bf16.mxu0 0
    %195 = vmatpush1.bf16.msra.mxu0 %v176
    %196 = vmatprep.subr.bf16.mxu0 0
    %197 = vmatpush1.bf16.msra.mxu0 %v175
    %198 = vmatprep.subr.bf16.mxu0 0
    %199 = vmatpush1.bf16.msra.mxu0 %v174
    %200 = vmatprep.subr.bf16.mxu0 0
    %201 = vmatpush1.bf16.msra.mxu0 %v173
    %202 = vmatprep.subr.bf16.mxu0 0
    %203 = vmatpush1.bf16.msra.mxu0 %v172
    %204 = vmatprep.subr.bf16.mxu0 0
    %205 = vmatpush2.bf16.msra.mxu0 0
    %206 = vmatprep.subr.bf16.mxu0 0
    %207 = vmatpush2.bf16.msra.mxu0 0
    %208 = vmatprep.subr.bf16.mxu0 0
    %209 = vmatpush2.bf16.msra.mxu0 0
    %210 = vmatprep.subr.bf16.mxu0 0
    %211 = vmatpush2.bf16.msra.mxu0 0
    %212 = vmatprep.subr.bf16.mxu0 0
    %213 = vmatpush2.bf16.msra.mxu0 0
    %214 = vmatprep.subr.bf16.mxu0 0
    %215 = vmatpush2.bf16.msra.mxu0 0
    %216 = vmatprep.subr.bf16.mxu0 0
    %217 = vmatpush2.bf16.msra.mxu0 0
    %218 = vmatprep.subr.bf16.mxu0 0
    %219 = vmatpush2.bf16.msra.mxu0 0
    %220 = vmatprep.mubr.bf16.mxu0 0
    %221 = vmatmul.mubr.bf16.gmra.mxu0 %v116
    %v222 = vpop.f32.mrf.mxu0
    %v223 = vadd.f32 %v138, %v222
    %v224 = vpop.f32.mrf.mxu0
    %v225 = vpop.f32.mrf.mxu0
    %v226 = vadd.f32 %v138, %v225
    %v227 = vpop.f32.mrf.mxu0
    %228 = vdwg.mxu0
    %v229 = vmul.f32 %v223, 0.5
    %v230 = vmul.f32 %v226, 0.5
    %v231 = vmul.f32 %v223, 0.70710677
    %v232 = vmul.f32 %v226, 0.70710677
    %v233 = verf.f32.pop %v231
    %v234 = verf.f32.pop %v232
    %v235 = vadd.f32 %v233, 1.0
    %v236 = vadd.f32 %v234, 1.0
    %v237 = vmul.f32 %v229, %v235
    %v238 = vmul.f32 %v230, %v236
    %v239 = vpack.c.bf16 %v238, %v237
    %v240 = vld [vmem:[#allocation7] sm:$0xf]
    %v241 = vld [vmem:[#allocation7 + $0x4] sm:$0xf]
    %v242 = vld [vmem:[#allocation7 + $0x8] sm:$0xf]
    %v243 = vld [vmem:[#allocation7 + $0xc] sm:$0xf]
    %v244 = vld [vmem:[#allocation7 + $0x10] sm:$0xf]
    %v245 = vld [vmem:[#allocation7 + $0x14] sm:$0xf]
    %v246 = vld [vmem:[#allocation7 + $0x18] sm:$0xf]
    %v247 = vld [vmem:[#allocation7 + $0x1c] sm:$0xf]
    %v248 = vld [vmem:[#allocation7 + $0x20] sm:$0xf]
    %v249 = vld [vmem:[#allocation7 + $0x24] sm:$0xf]
    %v250 = vld [vmem:[#allocation7 + $0x28] sm:$0xf]
    %v251 = vld [vmem:[#allocation7 + $0x2c] sm:$0xf]
    %v252 = vld [vmem:[#allocation7 + $0x30] sm:$0xf]
    %v253 = vld [vmem:[#allocation7 + $0x34] sm:$0xf]
    %v254 = vld [vmem:[#allocation7 + $0x38] sm:$0xf]
    %v255 = vld [vmem:[#allocation7 + $0x3c] sm:$0xf]
    %v256 = vld [vmem:[%s6] sm:$0x1]
    %v258 = vlaneseq
    %v259 = vshrl.u32 %v258, 7
    %v260 = vsub.s32 0, %v259
    %v261 = vrot.slane %v256, %v260
    %v279 = vunpack.c.l.b16 %v240
    %v280 = vunpack.c.l.b16 %v241
    %v281 = vunpack.c.l.b16 %v242
    %v282 = vunpack.c.l.b16 %v243
    %v283 = vunpack.c.l.b16 %v244
    %v284 = vunpack.c.l.b16 %v245
    %v285 = vunpack.c.l.b16 %v246
    %v286 = vunpack.c.l.b16 %v247
    %v287 = vunpack.c.l.b16 %v248
    %v288 = vunpack.c.l.b16 %v249
    %v289 = vunpack.c.l.b16 %v250
    %v290 = vunpack.c.l.b16 %v251
    %v291 = vunpack.c.l.b16 %v252
    %v292 = vunpack.c.l.b16 %v253
    %v293 = vunpack.c.l.b16 %v254
    %v294 = vunpack.c.l.b16 %v255
    %v295 = vpack.c.b16 %v280, %v279
    %v296 = vpack.c.b16 %v282, %v281
    %v297 = vpack.c.b16 %v284, %v283
    %v298 = vpack.c.b16 %v286, %v285
    %v299 = vpack.c.b16 %v288, %v287
    %v300 = vpack.c.b16 %v290, %v289
    %v301 = vpack.c.b16 %v292, %v291
    %v302 = vpack.c.b16 %v294, %v293
    %311 = vmatprep.subr.bf16.mxu0 0
    %312 = vmatpush1.bf16.msra.mxu0 %v302
    %313 = vmatprep.subr.bf16.mxu0 0
    %314 = vmatpush1.bf16.msra.mxu0 %v301
    %315 = vmatprep.subr.bf16.mxu0 0
    %316 = vmatpush1.bf16.msra.mxu0 %v300
    %317 = vmatprep.subr.bf16.mxu0 0
    %318 = vmatpush1.bf16.msra.mxu0 %v299
    %319 = vmatprep.subr.bf16.mxu0 0
    %320 = vmatpush1.bf16.msra.mxu0 %v298
    %321 = vmatprep.subr.bf16.mxu0 0
    %322 = vmatpush1.bf16.msra.mxu0 %v297
    %323 = vmatprep.subr.bf16.mxu0 0
    %324 = vmatpush1.bf16.msra.mxu0 %v296
    %325 = vmatprep.subr.bf16.mxu0 0
    %326 = vmatpush1.bf16.msra.mxu0 %v295
    %327 = vmatprep.subr.bf16.mxu0 0
    %328 = vmatpush2.bf16.msra.mxu0 0
    %329 = vmatprep.subr.bf16.mxu0 0
    %330 = vmatpush2.bf16.msra.mxu0 0
    %331 = vmatprep.subr.bf16.mxu0 0
    %332 = vmatpush2.bf16.msra.mxu0 0
    %333 = vmatprep.subr.bf16.mxu0 0
    %334 = vmatpush2.bf16.msra.mxu0 0
    %335 = vmatprep.subr.bf16.mxu0 0
    %336 = vmatpush2.bf16.msra.mxu0 0
    %337 = vmatprep.subr.bf16.mxu0 0
    %338 = vmatpush2.bf16.msra.mxu0 0
    %339 = vmatprep.subr.bf16.mxu0 0
    %340 = vmatpush2.bf16.msra.mxu0 0
    %341 = vmatprep.subr.bf16.mxu0 0
    %342 = vmatpush2.bf16.msra.mxu0 0
    %343 = vmatprep.mubr.bf16.mxu0 0
    %344 = vmatmul.mubr.bf16.gmra.mxu0 %v239
    %v345 = vpop.f32.mrf.mxu0
    %v346 = vadd.f32 %v261, %v345
    %v347 = vpop.f32.mrf.mxu0
    %v348 = vpop.f32.mrf.mxu0
    %v349 = vadd.f32 %v261, %v348
    %v350 = vpop.f32.mrf.mxu0
    %351 = vdwg.mxu0
    %352 = vst [vmem:[#allocation8] sm:$0xff] %v346
    %353 = vst [vmem:[#allocation8 + $0x8] sm:$0xff] %v349
    // Predicated region
    $region42: #{tpu_custom_call.1} parent=1 // pred_check
      _
    $region43: #{tpu_custom_call.1} parent=1 // pred_check_branch
      %355 = sbr.rel (0) target = $region45
    $region44: #{tpu_custom_call.1} parent=1 // pred_region
      %s357 = ssub.s32 256, 256
      %358 = vsyncadd [#allocation4], %s357
      %s359 = sshll.u32 [#allocation8], 4
      %s360 = int_to_ptr.vmem [resolvable:$true] %s359
      %365 = dma.vmem_to_hbm [thread:$0]  %s360, 256, %s7, [#allocation4], 128, 128, 8
    $region45: #{tpu_custom_call.1} parent=1 // pred_fallthru
      _
    // Predicated region
    $region46: #{tpu_custom_call.1} parent=1 // pred_check
      _
    $region47: #{tpu_custom_call.1} parent=1 // pred_check_branch
      %367 = sbr.rel (0) target = $region49
    $region48: #{tpu_custom_call.1} parent=1 // pred_region
      %368 = dma.done [#allocation4], 256
    $region49: #{tpu_custom_call.1} parent=1 // pred_fallthru
      _
    %369 = vsyncpa [#allocation3], 1
    %370 = vsyncpa [#allocation6], 1
    %371 = vsyncpa [#allocation4], 1

</llo_original>
